<compile_context>
chip_gen: v5e
topology: v5e:2x2
jax: 0.10.0
libtpu: 0.0.40
codegen_flags: <defaults>
</compile_context>

<pallas_src>
import jax
import jax.numpy as jnp
import numpy as np
from jax.experimental import pallas as pl
from jax.experimental.pallas import tpu as pltpu


# ------------------------- shared gate computation -------------------------- #
def _spatial_gate(x, w1t_ref, b1_ref, w2t_ref, b2_ref):
    """x: (N, C, HW) f32 value. Returns the sigmoid spatial gate, shape (N, HW)."""
    s = jnp.mean(x, axis=1)                                              # (N, HW)  pool over channels
    h = jnp.dot(s, w1t_ref[...], preferred_element_type=jnp.float32)     # (N, Hid) fc1
    h = jnp.maximum(h + b1_ref[...], 0.0)                                # ReLU
    a = jnp.dot(h, w2t_ref[...], preferred_element_type=jnp.float32)     # (N, HW)  fc2
    return jax.nn.sigmoid(a + b2_ref[...])                               # Sigmoid


def _gate_scale_kernel(x_ref, w1t_ref, b1_ref, w2t_ref, b2_ref, o_ref):
    # stride == 1 path: out = x * gate  (gate broadcast over channels/sublanes)
    x = x_ref[...].astype(jnp.float32)                                   # (N, C, HW)
    a = _spatial_gate(x, w1t_ref, b1_ref, w2t_ref, b2_ref)               # (N, HW)
    o_ref[...] = (x * a[:, None, :]).astype(o_ref.dtype)


def _gate_only_kernel(x_ref, w1t_ref, b1_ref, w2t_ref, b2_ref, o_ref):
    # stride == 2 path: only the tiny gate leaves the kernel (scale is fused into the conv).
    x = x_ref[...].astype(jnp.float32)                                   # (N, C, HW)
    o_ref[...] = _spatial_gate(x, w1t_ref, b1_ref, w2t_ref, b2_ref).astype(o_ref.dtype)


def _scaled_conv_kernel(cols_ref, gcols_ref, w_ref, o_ref):
    # cols/gcols: (Cin*9, N*Ho*Wo); w: (Cout, Cin*9); out: (Cout, N*Ho*Wo) -- lane dense.
    sc = cols_ref[...].astype(jnp.float32) * gcols_ref[...].astype(jnp.float32)
    o_ref[...] = jnp.dot(w_ref[...], sc,
                         preferred_element_type=jnp.float32).astype(o_ref.dtype)


# ------------------------------ wrappers ------------------------------------ #
def _gate_in_specs(n, c, hw, hid):
    return [
        pl.BlockSpec((n, c, hw), lambda i: (0, 0, 0)),   # x as (N, C, HW): lanes = HW
        pl.BlockSpec((hw, hid), lambda i: (0, 0)),       # fc1 weight (pre-transposed)
        pl.BlockSpec((1, hid), lambda i: (0, 0)),        # fc1 bias
        pl.BlockSpec((hid, hw), lambda i: (0, 0)),       # fc2 weight (pre-transposed)
        pl.BlockSpec((1, hw), lambda i: (0, 0)),         # fc2 bias
    ]


def spatial_attention_apply(x, w1t, b1, w2t, b2):
    """stride==1: returns x * spatial_gate(x), NCHW."""
    n, c, hh, ww = x.shape
    hw = hh * ww
    hid = w1t.shape[1]
    x_flat = x.reshape(n, c, hw)                          # pure reshape, no transpose
    out = pl.pallas_call(
        _gate_scale_kernel,
        out_shape=jax.ShapeDtypeStruct((n, c, hw), x.dtype),
        grid=(1,),                                        # whole problem in one lane-dense block
        in_specs=_gate_in_specs(n, c, hw, hid),
        out_specs=pl.BlockSpec((n, c, hw), lambda i: (0, 0, 0)),
        compiler_params=pltpu.CompilerParams(dimension_semantics=("arbitrary",)),
        cost_estimate=pl.CostEstimate(
            flops=int(4 * n * hw * hid + 2 * n * c * hw),
            transcendentals=int(n * hw),
            bytes_accessed=int(4 * (2 * n * c * hw + 2 * hw * hid + hw + hid)),
        ),
    )(x_flat, w1t, b1, w2t, b2)
    return out.reshape(n, c, hh, ww)


def spatial_attention_gate(x, w1t, b1, w2t, b2):
    """Returns only the (N, H*W) sigmoid gate (used on the stride==2 fused path)."""
    n, c, hh, ww = x.shape
    hw = hh * ww
    hid = w1t.shape[1]
    x_flat = x.reshape(n, c, hw)
    return pl.pallas_call(
        _gate_only_kernel,
        out_shape=jax.ShapeDtypeStruct((n, hw), jnp.float32),
        grid=(1,),
        in_specs=_gate_in_specs(n, c, hw, hid),
        out_specs=pl.BlockSpec((n, hw), lambda i: (0, 0)),
        compiler_params=pltpu.CompilerParams(dimension_semantics=("arbitrary",)),
        cost_estimate=pl.CostEstimate(
            flops=int(4 * n * hw * hid + n * c * hw),
            transcendentals=int(n * hw),
            bytes_accessed=int(4 * (n * c * hw + n * hw + 2 * hw * hid + hw + hid)),
        ),
    )(x_flat, w1t, b1, w2t, b2)


def scaled_conv3x3_stride2(x, gate, w_flat, cout):
    """conv3x3(x * gate, stride=2, pad=1, no bias), with the gate scaling fused into
    the Pallas matmul kernel so the scaled activation never hits HBM.
    x: (N, Cin, H, W); gate: (N, H*W); w_flat: (Cout, Cin*9)."""
    n, c, hh, ww = x.shape
    ho = (hh + 2 - 3) // 2 + 1
    wo = (ww + 2 - 3) // 2 + 1
    # im2col of the RAW input + matching gate taps (XLA glue on tiny tensors).
    # TODO(synk): fold the patch extraction into the kernel via strided ref slices
    # for large shapes; at these sizes the glue is a few KB.
    xp = jnp.pad(x, ((0, 0), (0, 0), (1, 1), (1, 1)))
    gp = jnp.pad(gate.reshape(n, 1, hh, ww), ((0, 0), (0, 0), (1, 1), (1, 1)))
    x_taps, g_taps = [], []
    for kh in range(3):
        for kw in range(3):
            x_taps.append(xp[:, :, kh:kh + 2 * (ho - 1) + 1:2, kw:kw + 2 * (wo - 1) + 1:2])
            g_taps.append(gp[:, :, kh:kh + 2 * (ho - 1) + 1:2, kw:kw + 2 * (wo - 1) + 1:2])
    cols = jnp.stack(x_taps, axis=2)                       # (N, Cin, 9, Ho, Wo)
    gcols = jnp.broadcast_to(jnp.stack(g_taps, axis=2), cols.shape)
    # feature order (ci, kh, kw) matches w.reshape(Cout, Cin*9); lanes = N*Ho*Wo
    cols = cols.transpose(1, 2, 0, 3, 4).reshape(c * 9, n * ho * wo)
    gcols = gcols.transpose(1, 2, 0, 3, 4).reshape(c * 9, n * ho * wo)
    y = pl.pallas_call(
        _scaled_conv_kernel,
        out_shape=jax.ShapeDtypeStruct((cout, n * ho * wo), x.dtype),
        grid=(1,),
        in_specs=[
            pl.BlockSpec((c * 9, n * ho * wo), lambda i: (0, 0)),
            pl.BlockSpec((c * 9, n * ho * wo), lambda i: (0, 0)),
            pl.BlockSpec((cout, c * 9), lambda i: (0, 0)),
        ],
        out_specs=pl.BlockSpec((cout, n * ho * wo), lambda i: (0, 0)),
        compiler_params=pltpu.CompilerParams(dimension_semantics=("arbitrary",)),
        cost_estimate=pl.CostEstimate(
            flops=int(2 * cout * c * 9 * n * ho * wo + c * 9 * n * ho * wo),
            transcendentals=0,
            bytes_accessed=int(4 * (2 * c * 9 * n * ho * wo + cout * c * 9 + cout * n * ho * wo)),
        ),
    )(cols, gcols, w_flat)
    # (Cout, N*Ho*Wo) lane-dense output -> NCHW (tiny transpose in glue)
    return y.reshape(cout, n, ho, wo).transpose(1, 0, 2, 3)


# ------------------------------ module wrapper ------------------------------ #
class SpatialAttention:
    def __init__(self, in_planes, out_planes, init_size, stride, key):
        self.stride = stride
        self.layer_size = init_size
        hh, ww = init_size
        in_size = hh * ww
        hid = in_size // 16
        k1, k2, k3, k4, k5 = jax.random.split(key, 5)
        # nn.Linear parameters (y = x @ W.T + b)
        self.w_fc1 = jax.random.normal(k1, (hid, in_size), jnp.float32) * 0.05
        self.b_fc1 = jax.random.normal(k2, (hid,), jnp.float32) * 0.05
        self.w_fc2 = jax.random.normal(k3, (in_size, hid), jnp.float32) * 0.05
        self.b_fc2 = jax.random.normal(k4, (in_size,), jnp.float32) * 0.05
        # pre-transposed / reshaped copies consumed by the kernels (done once, not per call)
        self.w1t = jnp.asarray(self.w_fc1.T)          # (HW, Hid)
        self.b1 = self.b_fc1.reshape(1, hid)
        self.w2t = jnp.asarray(self.w_fc2.T)          # (Hid, HW)
        self.b2 = self.b_fc2.reshape(1, in_size)
        if stride == 2:
            self.out_planes = out_planes
            self.w_out = jax.random.normal(k5, (out_planes, in_planes, 3, 3), jnp.float32) * 0.1
            self.w_out_flat = self.w_out.reshape(out_planes, in_planes * 9)

    def __call__(self, x):
        if self.stride == 1:
            return spatial_attention_apply(x, self.w1t, self.b1, self.w2t, self.b2)
        gate = spatial_attention_gate(x, self.w1t, self.b1, self.w2t, self.b2)
        return scaled_conv3x3_stride2(x, gate, self.w_out_flat, self.out_planes)


# ----------------------------- pure-JAX reference --------------------------- #
def _reference(x, mod):
    n, c, hh, ww = x.shape
    s = x.mean(axis=1).reshape(n, hh * ww)
    s = jnp.maximum(s @ mod.w_fc1.T + mod.b_fc1, 0.0)
    s = jax.nn.sigmoid(s @ mod.w_fc2.T + mod.b_fc2)
    out = x * s.reshape(n, 1, hh, ww)
    if mod.stride == 2:
        out = jax.lax.conv_general_dilated(
            out, mod.w_out, window_strides=(2, 2), padding=((1, 1), (1, 1)),
            dimension_numbers=('NCHW', 'OIHW', 'NCHW'))
    return out


if __name__ == "__main__":
    key = jax.random.PRNGKey(0)
    kx, kp1, kp2 = jax.random.split(key, 3)

    N, C, H, W = 2, 4, 16, 16             # in_size = 256 (lane-dense), hidden = 256 // 16 = 16
    x = jax.random.normal(kx, (N, C, H, W), jnp.float32)

    # stride = 1 path (gate + scale only)
    mod1 = SpatialAttention(in_planes=C, out_planes=C, init_size=(H, W), stride=1, key=kp1)
    out1 = jax.block_until_ready(mod1(x))
    ref1 = _reference(x, mod1)
    assert out1.shape == (N, C, H, W)
    np.testing.assert_allclose(np.asarray(out1), np.asarray(ref1), rtol=1e-4, atol=1e-5)

    # stride = 2 path (gate fused into the 3x3/stride-2 output conv)
    mod2 = SpatialAttention(in_planes=C, out_planes=16, init_size=(H, W), stride=2, key=kp2)
    out2 = jax.block_until_ready(mod2(x))
    ref2 = _reference(x, mod2)
    assert out2.shape == (N, 16, H // 2, W // 2)
    np.testing.assert_allclose(np.asarray(out2), np.asarray(ref2), rtol=1e-4, atol=1e-4)

    print("KERNEL_OK")
</pallas_src>

<mosaic_0001>
module attributes {stable_mosaic.version = 11 : i64} {
  func.func @_gate_scale_kernel(%arg0: i32, %arg1: memref<2x4x256xf32, #tpu.memory_space<vmem>>, %arg2: memref<256x16xf32, #tpu.memory_space<vmem>>, %arg3: memref<1x16xf32, #tpu.memory_space<vmem>>, %arg4: memref<16x256xf32, #tpu.memory_space<vmem>>, %arg5: memref<1x256xf32, #tpu.memory_space<vmem>>, %arg6: memref<2x4x256xf32, #tpu.memory_space<vmem>>) attributes {dimension_semantics = [#tpu.dimension_semantics<arbitrary>], iteration_bounds = array<i64: 1>, scalar_prefetch = 0 : i64, scratch_operands = 0 : i64, tpu.core_type = #tpu.core_type<tc>, window_params = [{pipeline_mode = #tpu.pipeline_mode<synchronous>, transform_indices = @transform_0, window_bounds = array<i64: 2, 4, 256>}, {pipeline_mode = #tpu.pipeline_mode<synchronous>, transform_indices = @transform_1, window_bounds = array<i64: 256, 16>}, {pipeline_mode = #tpu.pipeline_mode<synchronous>, transform_indices = @transform_2, window_bounds = array<i64: 1, 16>}, {pipeline_mode = #tpu.pipeline_mode<synchronous>, transform_indices = @transform_3, window_bounds = array<i64: 16, 256>}, {pipeline_mode = #tpu.pipeline_mode<synchronous>, transform_indices = @transform_4, window_bounds = array<i64: 1, 256>}, {pipeline_mode = #tpu.pipeline_mode<synchronous>, transform_indices = @transform_5, window_bounds = array<i64: 2, 4, 256>}]} {
    %c0 = arith.constant 0 : index
    %c0_0 = arith.constant 0 : index
    %c0_1 = arith.constant 0 : index
    %0 = vector.load %arg1[%c0, %c0_0, %c0_1] : memref<2x4x256xf32, #tpu.memory_space<vmem>>, vector<2x4x256xf32>
    %cst = arith.constant dense<0.000000e+00> : vector<2x256xf32>
    %1 = vector.multi_reduction <add>, %0, %cst [1] : vector<2x4x256xf32> to vector<2x256xf32>
    %cst_2 = arith.constant 4.000000e+00 : f32
    %2 = vector.broadcast %cst_2 : f32 to vector<2x256xf32>
    %3 = arith.divf %1, %2 : vector<2x256xf32>
    %c0_3 = arith.constant 0 : index
    %c0_4 = arith.constant 0 : index
    %4 = vector.load %arg2[%c0_3, %c0_4] : memref<256x16xf32, #tpu.memory_space<vmem>>, vector<256x16xf32>
    %cst_5 = arith.constant dense<0.000000e+00> : vector<2x16xf32>
    %5 = tpu.matmul %3, %4, %cst_5 {dimension_numbers = #tpu.dot_dimension_numbers<[1], [0], [0], [1], [0, 0, 1, 1], [], []>} : vector<2x256xf32>, vector<256x16xf32>, vector<2x16xf32> -> vector<2x16xf32>
    %c0_6 = arith.constant 0 : index
    %c0_7 = arith.constant 0 : index
    %6 = vector.load %arg3[%c0_6, %c0_7] : memref<1x16xf32, #tpu.memory_space<vmem>>, vector<1x16xf32>
    %7 = vector.broadcast %6 : vector<1x16xf32> to vector<2x16xf32>
    %8 = arith.addf %5, %7 : vector<2x16xf32>
    %cst_8 = arith.constant 0.000000e+00 : f32
    %9 = vector.broadcast %cst_8 : f32 to vector<2x16xf32>
    %10 = arith.maximumf %8, %9 : vector<2x16xf32>
    %c0_9 = arith.constant 0 : index
    %c0_10 = arith.constant 0 : index
    %11 = vector.load %arg4[%c0_9, %c0_10] : memref<16x256xf32, #tpu.memory_space<vmem>>, vector<16x256xf32>
    %cst_11 = arith.constant dense<0.000000e+00> : vector<2x256xf32>
    %12 = tpu.matmul %10, %11, %cst_11 {dimension_numbers = #tpu.dot_dimension_numbers<[1], [0], [0], [1], [0, 0, 1, 1], [], []>} : vector<2x16xf32>, vector<16x256xf32>, vector<2x256xf32> -> vector<2x256xf32>
    %c0_12 = arith.constant 0 : index
    %c0_13 = arith.constant 0 : index
    %13 = vector.load %arg5[%c0_12, %c0_13] : memref<1x256xf32, #tpu.memory_space<vmem>>, vector<1x256xf32>
    %14 = vector.broadcast %13 : vector<1x256xf32> to vector<2x256xf32>
    %15 = arith.addf %12, %14 : vector<2x256xf32>
    %16 = arith.negf %15 : vector<2x256xf32>
    %17 = math.exp %16 : vector<2x256xf32>
    %cst_14 = arith.constant 1.000000e+00 : f32
    %18 = vector.broadcast %cst_14 : f32 to vector<2x256xf32>
    %19 = arith.addf %18, %17 : vector<2x256xf32>
    %20 = arith.divf %18, %19 : vector<2x256xf32>
    %21 = vector.shape_cast %20 : vector<2x256xf32> to vector<2x1x256xf32>
    %22 = vector.broadcast %21 : vector<2x1x256xf32> to vector<2x4x256xf32>
    %23 = arith.mulf %0, %22 : vector<2x4x256xf32>
    %c0_15 = arith.constant 0 : index
    %c0_16 = arith.constant 0 : index
    %c0_17 = arith.constant 0 : index
    %24 = vector.load %arg6[%c0_15, %c0_16, %c0_17] : memref<2x4x256xf32, #tpu.memory_space<vmem>>, vector<2x4x256xf32>
    tpu.vector_store %arg6[%c0_15, %c0_16, %c0_17], %23 {strides = array<i32>} : memref<2x4x256xf32, #tpu.memory_space<vmem>>, vector<2x4x256xf32>,
    return
  }
  func.func @transform_0(%arg0: i32) -> (i32, i32, i32) {
    %c0_i32 = arith.constant 0 : i32
    %c0_i32_0 = arith.constant 0 : i32
    %c0_i32_1 = arith.constant 0 : i32
    %c0_i32_2 = arith.constant 0 : i32
    return %c0_i32, %c0_i32_0, %c0_i32_1 : i32, i32, i32
  }
  func.func @transform_1(%arg0: i32) -> (i32, i32) {
    %c0_i32 = arith.constant 0 : i32
    %c0_i32_0 = arith.constant 0 : i32
    %c0_i32_1 = arith.constant 0 : i32
    return %c0_i32, %c0_i32_0 : i32, i32
  }
  func.func @transform_2(%arg0: i32) -> (i32, i32) {
    %c0_i32 = arith.constant 0 : i32
    %c0_i32_0 = arith.constant 0 : i32
    %c0_i32_1 = arith.constant 0 : i32
    return %c0_i32, %c0_i32_0 : i32, i32
  }
  func.func @transform_3(%arg0: i32) -> (i32, i32) {
    %c0_i32 = arith.constant 0 : i32
    %c0_i32_0 = arith.constant 0 : i32
    %c0_i32_1 = arith.constant 0 : i32
    return %c0_i32, %c0_i32_0 : i32, i32
  }
  func.func @transform_4(%arg0: i32) -> (i32, i32) {
    %c0_i32 = arith.constant 0 : i32
    %c0_i32_0 = arith.constant 0 : i32
    %c0_i32_1 = arith.constant 0 : i32
    return %c0_i32, %c0_i32_0 : i32, i32
  }
  func.func @transform_5(%arg0: i32) -> (i32, i32, i32) {
    %c0_i32 = arith.constant 0 : i32
    %c0_i32_0 = arith.constant 0 : i32
    %c0_i32_1 = arith.constant 0 : i32
    %c0_i32_2 = arith.constant 0 : i32
    return %c0_i32, %c0_i32_0, %c0_i32_1 : i32, i32, i32
  }
}

</mosaic_0001>

<llo_original>
// kernel: tpu_custom_call.1
$region0: #{tpu_custom_call.1}
  #allocation0 [shape = 'u32[]', space=smem, size = 0x4, offset = 0x4, fixed_abs, tag = 'smem constant byte address 0x4 - core index']
  #allocation1 [shape = 'u32[72,128]{1,0:T(1,128)}', space=vmem, size = 0x9000, scoped, tag = 'internal scratch']
  %s0 = inlined_call_operand.vmem [shape: f32[2,4,256], index: 0, kind: input, shape index: {}]
  %s1 = inlined_call_operand.vmem [shape: f32[256,16], index: 1, kind: input, shape index: {}]
  %s2 = inlined_call_operand.vmem [shape: f32[1,16], index: 2, kind: input, shape index: {}]
  %s3 = inlined_call_operand.vmem [shape: f32[16,256], index: 3, kind: input, shape index: {}]
  %s4 = inlined_call_operand.vmem [shape: f32[1,256], index: 4, kind: input, shape index: {}]
  %s5 = inlined_call_operand.hbm [shape: f32[2,4,256], index: 5, kind: output, shape index: {}]
  %s6 = sld [smem:[#allocation0]]
  $region30: #{tpu_custom_call.1} parent=0
    _
  %s8 = ssub.s32 1, %s6
  %s9 = scalar_select 0, %s8, %s6
  $region1: #{tpu_custom_call.1} parent=0
    #allocation2 [shape = 'u8[8192]{0}', space=vmem, size = 0x2000, scoped, tag = 'output window, operand 0, single buffered']
    #allocation3 [shape = 's32[1]{0}', space=sflag, size = 0x4, scoped, tag = 'scoped memory for tpu_custom_call.1']
    %10 = vsyncpa [#allocation3], 0
    // Predicated region
    $region2: #{tpu_custom_call.1} parent=1 // pred_check
      _
    $region3: #{tpu_custom_call.1} parent=1 // pred_check_branch
      %12 = sbr.rel (0) target = $region5
    $region4: #{tpu_custom_call.1} parent=1 // pred_region
      _
    $region5: #{tpu_custom_call.1} parent=1 // pred_fallthru
      _
    // Predicated region
    $region6: #{tpu_custom_call.1} parent=1 // pred_check
      _
    $region7: #{tpu_custom_call.1} parent=1 // pred_check_branch
      %14 = sbr.rel (0) target = $region9
    $region8: #{tpu_custom_call.1} parent=1 // pred_region
      _
    $region9: #{tpu_custom_call.1} parent=1 // pred_fallthru
      _
    // Predicated region
    $region10: #{tpu_custom_call.1} parent=1 // pred_check
      _
    $region11: #{tpu_custom_call.1} parent=1 // pred_check_branch
      %16 = sbr.rel (0) target = $region13
    $region12: #{tpu_custom_call.1} parent=1 // pred_region
      _
    $region13: #{tpu_custom_call.1} parent=1 // pred_fallthru
      _
    // Predicated region
    $region14: #{tpu_custom_call.1} parent=1 // pred_check
      _
    $region15: #{tpu_custom_call.1} parent=1 // pred_check_branch
      %18 = sbr.rel (0) target = $region17
    $region16: #{tpu_custom_call.1} parent=1 // pred_region
      _
    $region17: #{tpu_custom_call.1} parent=1 // pred_fallthru
      _
    // Predicated region
    $region18: #{tpu_custom_call.1} parent=1 // pred_check
      _
    $region19: #{tpu_custom_call.1} parent=1 // pred_check_branch
      %20 = sbr.rel (0) target = $region21
    $region20: #{tpu_custom_call.1} parent=1 // pred_region
      _
    $region21: #{tpu_custom_call.1} parent=1 // pred_fallthru
      _
    %v21 = vld [vmem:[%s0] sm:$0xff]
    %v22 = vld [vmem:[%s0 + $0x8] sm:$0xff]
    %25 = vst [vmem:[#allocation1] ss:$2 sm:$0xff] %v21
    %v26 = vld.sshfl [vmem:[#allocation1] sm:$0xff pattern:$0x75316420]
    %v27 = vld.sshfl [vmem:[#allocation1 + $0x8] sm:$0xff pattern:$0x75316420]
    %s28 = scalar_lea.vmem [#allocation1], 16
    %29 = vst [vmem:[%s28] ss:$2 sm:$0xff] %v22
    %v30 = vld.sshfl [vmem:[#allocation1 + $0x10] sm:$0xff pattern:$0x75316420]
    %v31 = vld.sshfl [vmem:[#allocation1 + $0x18] sm:$0xff pattern:$0x75316420]
    %vm36 = vcmask 1043456
    %v37 = vsel %vm36, %v26, 0.0
    %v38 = vrot.slane %v37, 4
    %v39 = vadd.f32 %v37, %v38
    %v40 = vrot.slane %v39, 2
    %v41 = vadd.f32 %v39, %v40
    %v42 = vrot.slane %v41, 1
    %v43 = vadd.f32 %v41, %v42
    %v44 = vsel %vm36, %v27, 0.0
    %v45 = vrot.slane %v44, 4
    %v46 = vadd.f32 %v44, %v45
    %v47 = vrot.slane %v46, 2
    %v48 = vadd.f32 %v46, %v47
    %v49 = vrot.slane %v48, 1
    %v50 = vadd.f32 %v48, %v49
    %v51 = vsel %vm36, %v30, 0.0
    %v52 = vrot.slane %v51, 4
    %v53 = vadd.f32 %v51, %v52
    %v54 = vrot.slane %v53, 2
    %v55 = vadd.f32 %v53, %v54
    %v56 = vrot.slane %v55, 1
    %v57 = vadd.f32 %v55, %v56
    %v58 = vsel %vm36, %v31, 0.0
    %v59 = vrot.slane %v58, 4
    %v60 = vadd.f32 %v58, %v59
    %v61 = vrot.slane %v60, 2
    %v62 = vadd.f32 %v60, %v61
    %v63 = vrot.slane %v62, 1
    %v64 = vadd.f32 %v62, %v63
    %v65 = vrcp.pop 4.0
    %v66 = vmul.f32 4.0, %v65
    %v67 = vsub.f32 1.0, %v66
    %v68 = vmul.f32 %v65, %v67
    %v69 = vadd.f32 %v65, %v68
    %vm70 = vweird.f32 %v65
    %v71 = vsel %vm70, %v65, %v69
    %v72 = vmul.f32 %v43, %v71
    %v73 = vmul.f32 %v50, %v71
    %v74 = vmul.f32 %v57, %v71
    %v75 = vmul.f32 %v64, %v71
    %v76 = vld [vmem:[%s1] sm:$0xff]
    %v77 = vld [vmem:[%s1 + $0x8] sm:$0xff]
    %v78 = vld [vmem:[%s1 + $0x10] sm:$0xff]
    %v79 = vld [vmem:[%s1 + $0x18] sm:$0xff]
    %v80 = vld [vmem:[%s1 + $0x20] sm:$0xff]
    %v81 = vld [vmem:[%s1 + $0x28] sm:$0xff]
    %v82 = vld [vmem:[%s1 + $0x30] sm:$0xff]
    %v83 = vld [vmem:[%s1 + $0x38] sm:$0xff]
    %v84 = vld [vmem:[%s1 + $0x40] sm:$0xff]
    %v85 = vld [vmem:[%s1 + $0x48] sm:$0xff]
    %v86 = vld [vmem:[%s1 + $0x50] sm:$0xff]
    %v87 = vld [vmem:[%s1 + $0x58] sm:$0xff]
    %v88 = vld [vmem:[%s1 + $0x60] sm:$0xff]
    %v89 = vld [vmem:[%s1 + $0x68] sm:$0xff]
    %v90 = vld [vmem:[%s1 + $0x70] sm:$0xff]
    %v91 = vld [vmem:[%s1 + $0x78] sm:$0xff]
    %v92 = vld [vmem:[%s1 + $0x80] sm:$0xff]
    %v93 = vld [vmem:[%s1 + $0x88] sm:$0xff]
    %v94 = vld [vmem:[%s1 + $0x90] sm:$0xff]
    %v95 = vld [vmem:[%s1 + $0x98] sm:$0xff]
    %v96 = vld [vmem:[%s1 + $0xa0] sm:$0xff]
    %v97 = vld [vmem:[%s1 + $0xa8] sm:$0xff]
    %v98 = vld [vmem:[%s1 + $0xb0] sm:$0xff]
    %v99 = vld [vmem:[%s1 + $0xb8] sm:$0xff]
    %v100 = vld [vmem:[%s1 + $0xc0] sm:$0xff]
    %v101 = vld [vmem:[%s1 + $0xc8] sm:$0xff]
    %v102 = vld [vmem:[%s1 + $0xd0] sm:$0xff]
    %v103 = vld [vmem:[%s1 + $0xd8] sm:$0xff]
    %v104 = vld [vmem:[%s1 + $0xe0] sm:$0xff]
    %v105 = vld [vmem:[%s1 + $0xe8] sm:$0xff]
    %v106 = vld [vmem:[%s1 + $0xf0] sm:$0xff]
    %v107 = vld [vmem:[%s1 + $0xf8] sm:$0xff]
    %v108 = vld [vmem:[%s2] sm:$0x1]
    %v110 = vperm.slane %v108, 0
    %vm116 = vcmask 1041409
    %v117 = vsel %vm116, %v74, %v72
    %v118 = vsel %vm116, %v75, %v73
    %121 = vmatpush.msra.mxu0 %v91
    %122 = vmatpush.msra.mxu0 %v90
    %123 = vmatpush.msra.mxu0 %v89
    %124 = vmatpush.msra.mxu0 %v88
    %125 = vmatpush.msra.mxu0 %v87
    %126 = vmatpush.msra.mxu0 %v86
    %127 = vmatpush.msra.mxu0 %v85
    %128 = vmatpush.msra.mxu0 %v84
    %129 = vmatpush.msra.mxu0 %v83
    %130 = vmatpush.msra.mxu0 %v82
    %131 = vmatpush.msra.mxu0 %v81
    %132 = vmatpush.msra.mxu0 %v80
    %133 = vmatpush.msra.mxu0 %v79
    %134 = vmatpush.msra.mxu0 %v78
    %135 = vmatpush.msra.mxu0 %v77
    %136 = vmatpush.msra.mxu0 %v76
    %137 = vmatmul.f32.gmra.mxu0 %v117
    %v138 = vpop.f32.mrf.mxu0
    %v139 = vadd.f32 %v110, %v138
    %140 = vdwg.mxu0
    %141 = vmatpush.msra.mxu0 %v107
    %142 = vmatpush.msra.mxu0 %v106
    %143 = vmatpush.msra.mxu0 %v105
    %144 = vmatpush.msra.mxu0 %v104
    %145 = vmatpush.msra.mxu0 %v103
    %146 = vmatpush.msra.mxu0 %v102
    %147 = vmatpush.msra.mxu0 %v101
    %148 = vmatpush.msra.mxu0 %v100
    %149 = vmatpush.msra.mxu0 %v99
    %150 = vmatpush.msra.mxu0 %v98
    %151 = vmatpush.msra.mxu0 %v97
    %152 = vmatpush.msra.mxu0 %v96
    %153 = vmatpush.msra.mxu0 %v95
    %154 = vmatpush.msra.mxu0 %v94
    %155 = vmatpush.msra.mxu0 %v93
    %156 = vmatpush.msra.mxu0 %v92
    %157 = vmatmul.f32.gmra.mxu0 %v118
    %v158 = vpop.f32.mrf.mxu0
    %v159 = vadd.f32 %v139, %v158
    %160 = vdwg.mxu0
    %v161 = vmax.f32 %v159, 0.0
    %v162 = vld [vmem:[%s3] sm:$0xff]
    %v163 = vld [vmem:[%s3 + $0x8] sm:$0xff]
    %v164 = vld [vmem:[%s3 + $0x10] sm:$0xff]
    %v165 = vld [vmem:[%s3 + $0x18] sm:$0xff]
    %v166 = vld [vmem:[%s4] sm:$0x3]
    %v168 = vperm.slane %v166, 0
    %v169 = vperm.slane %v166, 1
    %vm172 = vcmask 130048
    %v174 = vsel %vm172, %v161, 0
    %176 = vmatpush.msra.mxu0 0.0
    %177 = vmatpush.msra.mxu0 0.0
    %178 = vmatpush.msra.mxu0 0.0
    %179 = vmatpush.msra.mxu0 0.0
    %180 = vmatpush.msra.mxu0 0.0
    %181 = vmatpush.msra.mxu0 0.0
    %182 = vmatpush.msra.mxu0 0.0
    %183 = vmatpush.msra.mxu0 0.0
    %184 = vmatpush.msra.mxu0 0.0
    %185 = vmatpush.msra.mxu0 0.0
    %186 = vmatpush.msra.mxu0 0.0
    %187 = vmatpush.msra.mxu0 0.0
    %188 = vmatpush.msra.mxu0 0.0
    %189 = vmatpush.msra.mxu0 0.0
    %190 = vmatpush.msra.mxu0 %v164
    %191 = vmatpush.msra.mxu0 %v162
    %192 = vmatmul.f32.gmra.mxu0 %v174
    %v193 = vpop.f32.mrf.mxu0
    %v194 = vadd.f32 %v168, %v193
    %195 = vdwg.mxu0
    %196 = vmatpush.msra.mxu0 0.0
    %197 = vmatpush.msra.mxu0 0.0
    %198 = vmatpush.msra.mxu0 0.0
    %199 = vmatpush.msra.mxu0 0.0
    %200 = vmatpush.msra.mxu0 0.0
    %201 = vmatpush.msra.mxu0 0.0
    %202 = vmatpush.msra.mxu0 0.0
    %203 = vmatpush.msra.mxu0 0.0
    %204 = vmatpush.msra.mxu0 0.0
    %205 = vmatpush.msra.mxu0 0.0
    %206 = vmatpush.msra.mxu0 0.0
    %207 = vmatpush.msra.mxu0 0.0
    %208 = vmatpush.msra.mxu0 0.0
    %209 = vmatpush.msra.mxu0 0.0
    %210 = vmatpush.msra.mxu0 %v165
    %211 = vmatpush.msra.mxu0 %v163
    %212 = vmatmul.f32.gmra.mxu0 %v174
    %v213 = vpop.f32.mrf.mxu0
    %v214 = vadd.f32 %v169, %v213
    %215 = vdwg.mxu0
    %v216 = vxor.u32 %v194, 2147483648
    %v217 = vxor.u32 %v214, 2147483648
    %v218 = vmul.f32 %v216, 1.442695
    %v219 = vpow.pop %v218
    %v220 = vmul.f32 %v217, 1.442695
    %v221 = vpow.pop %v220
    %v222 = vadd.f32 %v219, 1.0
    %v223 = vadd.f32 %v221, 1.0
    %v224 = vrcp.pop %v222
    %v225 = vmul.f32 %v222, %v224
    %v226 = vsub.f32 1.0, %v225
    %v227 = vmul.f32 %v224, %v226
    %v228 = vadd.f32 %v224, %v227
    %vm229 = vweird.f32 %v222
    %vm230 = vweird.f32 %v224
    %vm231 = vmor %vm229, %vm230
    %v232 = vsel %vm231, %v224, %v228
    %v233 = vand.u32 2147483647, %v222
    %vm234 = vcmp.eq.f32.partialorder %v233, 8.507059e+37
    %v235 = vand.u32 %v222, 2147483648
    %v236 = vor.u32 1.1754944e-38, %v235
    %v237 = vsel %vm234, %v236, %v232
    %v238 = vmul.f32 1.0, %v237
    %v239 = vrcp.pop %v223
    %v240 = vmul.f32 %v223, %v239
    %v241 = vsub.f32 1.0, %v240
    %v242 = vmul.f32 %v239, %v241
    %v243 = vadd.f32 %v239, %v242
    %vm244 = vweird.f32 %v223
    %vm245 = vweird.f32 %v239
    %vm246 = vmor %vm244, %vm245
    %v247 = vsel %vm246, %v239, %v243
    %v248 = vand.u32 2147483647, %v223
    %vm249 = vcmp.eq.f32.partialorder %v248, 8.507059e+37
    %v250 = vand.u32 %v223, 2147483648
    %v251 = vor.u32 1.1754944e-38, %v250
    %v252 = vsel %vm249, %v251, %v247
    %v253 = vmul.f32 1.0, %v252
    %v256 = vrot.slane %v253, 7
    %vm257 = vcmask 1040384
    %v258 = vsel %vm257, %v238, %v256
    %v259 = vsel %vm116, %v238, %v256
    %v260 = vrot.slane %v259, 1
    %v261 = vperm.slane %v258, 0
    %v262 = vperm.slane %v258, 1
    %v263 = vperm.slane %v260, 0
    %v264 = vperm.slane %v260, 1
    %v265 = vrot.slane %v262, 4
    %v266 = vrot.slane %v264, 4
    %v267 = vsel %vm36, %v261, %v265
    %v268 = vsel %vm36, %v263, %v266
    %v271 = vmul.f32 %v21, %v267
    %v272 = vmul.f32 %v22, %v268
    %273 = vst [vmem:[#allocation2] sm:$0xff] %v271
    %274 = vst [vmem:[#allocation2 + $0x8] sm:$0xff] %v272
    // Predicated region
    $region22: #{tpu_custom_call.1} parent=1 // pred_check
      _
    $region23: #{tpu_custom_call.1} parent=1 // pred_check_branch
      %276 = sbr.rel (0) target = $region25
    $region24: #{tpu_custom_call.1} parent=1 // pred_region
      %278 = vsyncadd [#allocation3], 0
      %s279 = sshll.u32 [#allocation2], 4
      %s280 = int_to_ptr.vmem [resolvable:$true] %s279
      %s281 = sshll.u32 %s5, 4
      %s282 = int_to_ptr.hbm [resolvable:$true] %s281
      %287 = dma.vmem_to_hbm [thread:$0]  %s280, 256, %s282, [#allocation3], 128, 128, 8
    $region25: #{tpu_custom_call.1} parent=1 // pred_fallthru
      _
    // Predicated region
    $region26: #{tpu_custom_call.1} parent=1 // pred_check
      _
    $region27: #{tpu_custom_call.1} parent=1 // pred_check_branch
      %289 = sbr.rel (0) target = $region29
    $region28: #{tpu_custom_call.1} parent=1 // pred_region
      %291 = dma.done [#allocation3], 256
    $region29: #{tpu_custom_call.1} parent=1 // pred_fallthru
      _
    %292 = vsyncpa [#allocation3], 1

</llo_original>
